<compile_context>
chip_gen: v5e
topology: v5e:2x2
jax: 0.10.0
libtpu: 0.0.40
codegen_flags: <defaults>
</compile_context>

<pallas_src>
import jax
import jax.numpy as jnp
from jax.experimental import pallas as pl
from jax.experimental.pallas import tpu as pltpu


def find_multiple(n: int, k: int) -> int:
    if n % k == 0:
        return n
    return n + k - n % k


def prepare_ffn_weights(w1, w3, w2):
    """One-time (init-time) conversion of torch-layout weights to [in, out] layout.

    w1, w3 : [hidden, dim]   w2 : [dim, hidden]
    Returns w1t, w3t : [dim, hidden] and w2t : [hidden, dim].

    The layout is tiling-independent, so tile_hidden can be tuned per TPU generation
    at call time without re-laying-out weights.
    """
    hidden, dim = w1.shape
    assert w3.shape == (hidden, dim) and w2.shape == (dim, hidden)
    return w1.T, w3.T, w2.T


def _vmem_capacity_bytes() -> int:
    """Physical VMEM per core; conservative (v7x-sized) fallback if query fails."""
    try:
        info = pltpu.get_tpu_info()
        cap = getattr(info, "vmem_capacity_bytes", None)
        if cap:
            return int(cap)
    except Exception:
        pass
    return 64 << 20


def _default_tiles(vmem_cap: int):
    """Generation-aware (tile_m, tile_hidden) defaults."""
    if vmem_cap >= (100 << 20):
        # v5e / v6e: 128 MiB VMEM.  Big token tile -> MXU-bound weight streaming.
        return 1024, 512
    # v7x: 64 MiB per-TC VMEM.  Halve the hidden tile so a large token tile still fits.
    return 768, 256


def _vmem_estimate(tile_m, tile_hidden, dim, xb, wb, ob, use_acc):
    return (2 * tile_m * dim * xb                 # x tiles (double-buffered)
            + 2 * dim * tile_hidden * wb          # W1^T tiles
            + 2 * dim * tile_hidden * wb          # W3^T tiles
            + 2 * tile_hidden * dim * wb          # W2^T tiles
            + 2 * tile_m * dim * ob               # output tiles
            + (tile_m * dim * 4 if use_acc else 0)
            + 3 * tile_m * tile_hidden * 4)       # h1 / h3 / g f32 temporaries


def _make_kernel(use_acc_scratch):
    def _chunk_contrib(x_ref, w1_ref, w3_ref, w2_ref):
        x = x_ref[...]
        # Two MXU matmuls sharing the same LHS tile (gate + up projections).
        h1 = jnp.dot(x, w1_ref[...], preferred_element_type=jnp.float32)
        h3 = jnp.dot(x, w3_ref[...], preferred_element_type=jnp.float32)
        g = (h1 * jax.nn.sigmoid(h1)) * h3        # SiLU(h1) * h3, f32
        # Down-projection contribution for this hidden chunk.
        return jnp.dot(g.astype(w2_ref.dtype), w2_ref[...],
                       preferred_element_type=jnp.float32)

    if use_acc_scratch:
        def kernel(x_ref, w1_ref, w3_ref, w2_ref, o_ref, acc_ref):
            h = pl.program_id(1)

            @pl.when(h == 0)
            def _():
                acc_ref[...] = jnp.zeros_like(acc_ref)

            acc_ref[...] += _chunk_contrib(x_ref, w1_ref, w3_ref, w2_ref)

            @pl.when(h == pl.num_programs(1) - 1)
            def _():
                # TODO(synk): ffn_dropout omitted (eval-mode identity).
                o_ref[...] = acc_ref[...].astype(o_ref.dtype)
    else:
        # f32 output: accumulate straight into the VMEM-resident output block.
        def kernel(x_ref, w1_ref, w3_ref, w2_ref, o_ref):
            h = pl.program_id(1)

            @pl.when(h == 0)
            def _():
                o_ref[...] = jnp.zeros_like(o_ref)

            # TODO(synk): ffn_dropout omitted (eval-mode identity).
            o_ref[...] += _chunk_contrib(x_ref, w1_ref, w3_ref, w2_ref)

    return kernel


def feed_forward(x, w1t, w3t, w2t, *, tile_hidden=None, tile_m=None):
    """SwiGLU FFN forward (eval mode). Weights must come from prepare_ffn_weights.

    x   : [..., dim]
    w1t : [dim, hidden]   (W1^T)
    w3t : [dim, hidden]   (W3^T)
    w2t : [hidden, dim]   (W2^T)
    returns [..., dim] in x.dtype
    """
    orig_shape = x.shape
    dim = orig_shape[-1]
    hidden = w1t.shape[1]
    assert w1t.shape == (dim, hidden), (w1t.shape, dim, hidden)
    assert w3t.shape == (dim, hidden), (w3t.shape, dim, hidden)
    assert w2t.shape == (hidden, dim), (w2t.shape, hidden, dim)
    assert hidden % 128 == 0, hidden

    vmem_cap = _vmem_capacity_bytes()
    vmem_soft = int(0.85 * vmem_cap)         # headroom for Mosaic internal scratch

    dflt_m, dflt_h = _default_tiles(vmem_cap)
    if tile_m is None:
        tile_m = dflt_m
    if tile_hidden is None:
        tile_hidden = dflt_h

    # tile_hidden: a multiple of 128 that divides hidden (128 always works).
    tile_hidden = max(128, min(int(tile_hidden), hidden))
    tile_hidden = (tile_hidden // 128) * 128
    while hidden % tile_hidden != 0:
        tile_hidden -= 128

    x2d = x.reshape(-1, dim)
    T = x2d.shape[0]
    out_dtype = x.dtype

    # Sublane granularity: 8 rows for 4-byte dtypes, 16 for 2-byte (bf16) dtypes.
    sub = 8 if jnp.dtype(x.dtype).itemsize >= 4 else 16
    tile_m = max(sub, min(int(tile_m), find_multiple(T, sub)))
    tile_m = find_multiple(tile_m, sub)

    use_acc_scratch = out_dtype != jnp.float32
    xb = jnp.dtype(x.dtype).itemsize
    wb = jnp.dtype(w1t.dtype).itemsize
    ob = jnp.dtype(out_dtype).itemsize

    def est(tm, th):
        return _vmem_estimate(tm, th, dim, xb, wb, ob, use_acc_scratch)

    # Auto-shrink tiles if the estimated footprint exceeds this generation's budget.
    while est(tile_m, tile_hidden) > vmem_soft and tile_m > sub:
        tile_m = max(sub, find_multiple(tile_m // 2, sub))
    if est(tile_m, tile_hidden) > vmem_soft and tile_hidden > 128:
        tile_hidden = 128

    n_chunks = hidden // tile_hidden

    T_pad = find_multiple(T, tile_m)
    if T_pad != T:
        x2d = jnp.pad(x2d, ((0, T_pad - T), (0, 0)))
    n_m = T_pad // tile_m

    kernel = _make_kernel(use_acc_scratch)
    scratch_shapes = ([pltpu.VMEM((tile_m, dim), jnp.float32)]
                      if use_acc_scratch else [])

    vmem_limit = int(min(max(int(1.5 * est(tile_m, tile_hidden)), 32 << 20), vmem_soft))

    out = pl.pallas_call(
        kernel,
        out_shape=jax.ShapeDtypeStruct((T_pad, dim), out_dtype),
        grid_spec=pltpu.PrefetchScalarGridSpec(
            num_scalar_prefetch=0,
            grid=(n_m, n_chunks),                                      # reduction last
            in_specs=[
                pl.BlockSpec((tile_m, dim), lambda i, h: (i, 0)),      # x tile
                pl.BlockSpec((dim, tile_hidden), lambda i, h: (0, h)), # W1^T chunk
                pl.BlockSpec((dim, tile_hidden), lambda i, h: (0, h)), # W3^T chunk
                pl.BlockSpec((tile_hidden, dim), lambda i, h: (h, 0)), # W2^T chunk
            ],
            out_specs=pl.BlockSpec((tile_m, dim), lambda i, h: (i, 0)),
            scratch_shapes=scratch_shapes,
        ),
        compiler_params=pltpu.CompilerParams(
            dimension_semantics=("parallel", "arbitrary"),
            vmem_limit_bytes=vmem_limit,
        ),
    )(x2d, w1t, w3t, w2t)

    if T_pad != T:
        out = out[:T]
    return out.reshape(orig_shape)


def feed_forward_ref(x, w1, w3, w2):
    """Pure-JAX reference (eval mode, dropout = identity), torch weight layout."""
    h1 = x @ w1.T
    h3 = x @ w3.T
    return (jax.nn.silu(h1) * h3) @ w2.T


if __name__ == "__main__":
    # Small config: dim=128, multiple_of=128 -> hidden = find_multiple(512, 128) = 512
    dim = 128
    multiple_of = 128
    hidden = find_multiple(4 * dim, multiple_of)   # 512
    batch, seq = 2, 8                              # T = 16 tokens

    key = jax.random.PRNGKey(0)
    kx, k1, k3, k2 = jax.random.split(key, 4)
    initializer_range = 0.02
    x = jax.random.normal(kx, (batch, seq, dim), dtype=jnp.float32)
    w1 = initializer_range * jax.random.normal(k1, (hidden, dim), dtype=jnp.float32)
    w3 = initializer_range * jax.random.normal(k3, (hidden, dim), dtype=jnp.float32)
    w2 = initializer_range * jax.random.normal(k2, (dim, hidden), dtype=jnp.float32)

    # One-time weight preparation (would live at module init, not in the forward path).
    w1t, w3t, w2t = prepare_ffn_weights(w1, w3, w2)
    y_ref = feed_forward_ref(x, w1, w3, w2)

    # (1) f32 path, generation-aware default tiles (auto-clamped to T).
    y = jax.block_until_ready(feed_forward(x, w1t, w3t, w2t))
    assert y.shape == x.shape, (y.shape, x.shape)
    assert jnp.allclose(y, y_ref, atol=1e-4, rtol=1e-4), float(jnp.max(jnp.abs(y - y_ref)))

    # (2) f32 path, forced small tiles -> grid (2 token tiles x 4 hidden chunks)
    #     exercises both the parallel axis and the reduction accumulation.
    y2 = jax.block_until_ready(feed_forward(x, w1t, w3t, w2t, tile_hidden=128, tile_m=8))
    assert jnp.allclose(y2, y_ref, atol=1e-4, rtol=1e-4), \
        float(jnp.max(jnp.abs(y2 - y_ref)))

    # (3) bf16 path (f32 VMEM scratch accumulator), multi-chunk reduction,
    #     loose tolerance vs f32 reference.
    xb16 = x.astype(jnp.bfloat16)
    w1tb, w3tb, w2tb = prepare_ffn_weights(w1.astype(jnp.bfloat16),
                                           w3.astype(jnp.bfloat16),
                                           w2.astype(jnp.bfloat16))
    yb = jax.block_until_ready(feed_forward(xb16, w1tb, w3tb, w2tb, tile_hidden=256))
    err = float(jnp.max(jnp.abs(yb.astype(jnp.float32) - y_ref)))
    assert jnp.allclose(yb.astype(jnp.float32), y_ref, atol=2e-2, rtol=5e-2), err

    print("KERNEL_OK")
</pallas_src>

<mosaic_0001>
module attributes {stable_mosaic.version = 11 : i64} {
  func.func @kernel(%arg0: i32, %arg1: i32, %arg2: memref<16x128xf32, #tpu.memory_space<vmem>>, %arg3: memref<128x256xf32, #tpu.memory_space<vmem>>, %arg4: memref<128x256xf32, #tpu.memory_space<vmem>>, %arg5: memref<256x128xf32, #tpu.memory_space<vmem>>, %arg6: memref<16x128xf32, #tpu.memory_space<vmem>>) attributes {dimension_semantics = [#tpu.dimension_semantics<parallel>, #tpu.dimension_semantics<arbitrary>], iteration_bounds = array<i64: 1, 2>, scalar_prefetch = 0 : i64, scratch_operands = 0 : i64, tpu.core_type = #tpu.core_type<tc>, window_params = [{transform_indices = @transform_0, window_bounds = array<i64: 16, 128>}, {transform_indices = @transform_1, window_bounds = array<i64: 128, 256>}, {transform_indices = @transform_2, window_bounds = array<i64: 128, 256>}, {transform_indices = @transform_3, window_bounds = array<i64: 256, 128>}, {transform_indices = @transform_4, window_bounds = array<i64: 16, 128>}]} {
    %c0_i32 = arith.constant 0 : i32
    %0 = arith.cmpi eq, %arg1, %c0_i32 : i32
    %1 = arith.extui %0 : i1 to i32
    %c0_i32_0 = arith.constant 0 : i32
    %2 = arith.cmpi ne, %1, %c0_i32_0 : i32
    scf.if %2 {
      %cst_15 = arith.constant 0.000000e+00 : f32
      %20 = vector.broadcast %cst_15 : f32 to vector<16x128xf32>
      %c0_16 = arith.constant 0 : index
      %c0_17 = arith.constant 0 : index
      %21 = vector.load %arg6[%c0_16, %c0_17] : memref<16x128xf32, #tpu.memory_space<vmem>>, vector<16x128xf32>
      tpu.vector_store %arg6[%c0_16, %c0_17], %20 {strides = array<i32>} : memref<16x128xf32, #tpu.memory_space<vmem>>, vector<16x128xf32>,
    } else {
    }
    %c0 = arith.constant 0 : index
    %c0_1 = arith.constant 0 : index
    %3 = vector.load %arg6[%c0, %c0_1] : memref<16x128xf32, #tpu.memory_space<vmem>>, vector<16x128xf32>
    %c0_2 = arith.constant 0 : index
    %c0_3 = arith.constant 0 : index
    %4 = vector.load %arg2[%c0_2, %c0_3] : memref<16x128xf32, #tpu.memory_space<vmem>>, vector<16x128xf32>
    %c0_4 = arith.constant 0 : index
    %c0_5 = arith.constant 0 : index
    %5 = vector.load %arg3[%c0_4, %c0_5] : memref<128x256xf32, #tpu.memory_space<vmem>>, vector<128x256xf32>
    %cst = arith.constant dense<0.000000e+00> : vector<16x256xf32>
    %6 = tpu.matmul %4, %5, %cst {dimension_numbers = #tpu.dot_dimension_numbers<[1], [0], [0], [1], [0, 0, 1, 1], [], []>} : vector<16x128xf32>, vector<128x256xf32>, vector<16x256xf32> -> vector<16x256xf32>
    %c0_6 = arith.constant 0 : index
    %c0_7 = arith.constant 0 : index
    %7 = vector.load %arg4[%c0_6, %c0_7] : memref<128x256xf32, #tpu.memory_space<vmem>>, vector<128x256xf32>
    %cst_8 = arith.constant dense<0.000000e+00> : vector<16x256xf32>
    %8 = tpu.matmul %4, %7, %cst_8 {dimension_numbers = #tpu.dot_dimension_numbers<[1], [0], [0], [1], [0, 0, 1, 1], [], []>} : vector<16x128xf32>, vector<128x256xf32>, vector<16x256xf32> -> vector<16x256xf32>
    %9 = arith.negf %6 : vector<16x256xf32>
    %10 = math.exp %9 : vector<16x256xf32>
    %cst_9 = arith.constant 1.000000e+00 : f32
    %11 = vector.broadcast %cst_9 : f32 to vector<16x256xf32>
    %12 = arith.addf %11, %10 : vector<16x256xf32>
    %13 = arith.divf %11, %12 : vector<16x256xf32>
    %14 = arith.mulf %6, %13 : vector<16x256xf32>
    %15 = arith.mulf %14, %8 : vector<16x256xf32>
    %c0_10 = arith.constant 0 : index
    %c0_11 = arith.constant 0 : index
    %16 = vector.load %arg5[%c0_10, %c0_11] : memref<256x128xf32, #tpu.memory_space<vmem>>, vector<256x128xf32>
    %cst_12 = arith.constant dense<0.000000e+00> : vector<16x128xf32>
    %17 = tpu.matmul %15, %16, %cst_12 {dimension_numbers = #tpu.dot_dimension_numbers<[1], [0], [0], [1], [0, 0, 1, 1], [], []>} : vector<16x256xf32>, vector<256x128xf32>, vector<16x128xf32> -> vector<16x128xf32>
    %18 = arith.addf %3, %17 : vector<16x128xf32>
    %c0_13 = arith.constant 0 : index
    %c0_14 = arith.constant 0 : index
    %19 = vector.load %arg6[%c0_13, %c0_14] : memref<16x128xf32, #tpu.memory_space<vmem>>, vector<16x128xf32>
    tpu.vector_store %arg6[%c0_13, %c0_14], %18 {strides = array<i32>} : memref<16x128xf32, #tpu.memory_space<vmem>>, vector<16x128xf32>,
    return
  }
  func.func @transform_0(%arg0: i32, %arg1: i32) -> (i32, i32) {
    %c0_i32 = arith.constant 0 : i32
    %c0_i32_0 = arith.constant 0 : i32
    return %arg0, %c0_i32 : i32, i32
  }
  func.func @transform_1(%arg0: i32, %arg1: i32) -> (i32, i32) {
    %c0_i32 = arith.constant 0 : i32
    %c0_i32_0 = arith.constant 0 : i32
    return %c0_i32, %arg1 : i32, i32
  }
  func.func @transform_2(%arg0: i32, %arg1: i32) -> (i32, i32) {
    %c0_i32 = arith.constant 0 : i32
    %c0_i32_0 = arith.constant 0 : i32
    return %c0_i32, %arg1 : i32, i32
  }
  func.func @transform_3(%arg0: i32, %arg1: i32) -> (i32, i32) {
    %c0_i32 = arith.constant 0 : i32
    %c0_i32_0 = arith.constant 0 : i32
    return %arg1, %c0_i32 : i32, i32
  }
  func.func @transform_4(%arg0: i32, %arg1: i32) -> (i32, i32) {
    %c0_i32 = arith.constant 0 : i32
    %c0_i32_0 = arith.constant 0 : i32
    return %arg0, %c0_i32 : i32, i32
  }
}

</mosaic_0001>

<llo_original>
// kernel: tpu_custom_call.1
$region0: #{tpu_custom_call.1}
  #allocation0 [shape = 'u32[]', space=smem, size = 0x4, offset = 0x4, fixed_abs, tag = 'smem constant byte address 0x4 - core index']
  #allocation1 [shape = 'u32[72,128]{1,0:T(1,128)}', space=vmem, size = 0x9000, scoped, tag = 'internal scratch']
  %s0 = inlined_call_operand.hbm [shape: f32[16,128], index: 0, kind: input, shape index: {}]
  %s1 = inlined_call_operand.hbm [shape: f32[128,512], index: 1, kind: input, shape index: {}]
  %s2 = inlined_call_operand.hbm [shape: f32[128,512], index: 2, kind: input, shape index: {}]
  %s3 = inlined_call_operand.hbm [shape: f32[512,128], index: 3, kind: input, shape index: {}]
  %s4 = inlined_call_operand.hbm [shape: f32[16,128], index: 4, kind: output, shape index: {}]
  %s5 = sld [smem:[#allocation0]]
  $region69: #{tpu_custom_call.1} parent=0
    _
  %s7 = ssub.s32 1, %s5
  %s8 = scalar_select 0, %s7, %s5
  $region1: #{tpu_custom_call.1} parent=0
    #allocation2 [shape = 'u8[8192]{0}', space=vmem, size = 0x2000, scoped, tag = 'input window, operand 0, single buffered']
    #allocation3 [shape = 's32[2]{0}', space=sflag, size = 0x8, scoped, tag = 'scoped memory for tpu_custom_call.1']
    #allocation4 [shape = 's32[2]{0}', space=sflag, size = 0x8, scoped, tag = 'scoped memory for tpu_custom_call.1']
    #allocation5 [shape = 'u8[262144]{0}', space=vmem, size = 0x40000, scoped, tag = 'input window, operand 1']
    #allocation6 [shape = 's32[2]{0}', space=sflag, size = 0x8, scoped, tag = 'scoped memory for tpu_custom_call.1']
    #allocation7 [shape = 'u8[262144]{0}', space=vmem, size = 0x40000, scoped, tag = 'input window, operand 2']
    #allocation8 [shape = 'u8[262144]{0}', space=vmem, size = 0x40000, scoped, tag = 'input window, operand 3']
    #allocation9 [shape = 's32[2]{0}', space=sflag, size = 0x8, scoped, tag = 'scoped memory for tpu_custom_call.1']
    #allocation10 [shape = 'u8[8192]{0}', space=vmem, size = 0x2000, scoped, tag = 'output window, operand 0, single buffered']
    %9 = vsyncpa [#allocation3], 0
    %10 = vsyncpa [#allocation6], 0
    %s11 = scalar_lea.sflag [#allocation6], 1
    %12 = vsyncpa %s11, 0
    %13 = vsyncpa [#allocation9], 0
    %s14 = scalar_lea.sflag [#allocation9], 1
    %15 = vsyncpa %s14, 0
    %16 = vsyncpa [#allocation4], 0
    loop: start=0, step=1, limit=4
    $region2: #{tpu_custom_call.1} parent=1 // loop_pre_header
      _
    $region3: #{tpu_custom_call.1} parent=1 // loop_header
      %s18 = sphi 0, %s22
      %p19 = scmp.ge.s32.totalorder %s18, 4
      %s25 = sphi 0, %s37
      %s26 = sphi 0, %s33
      %s27 = sphi 0, %s25
      %s28 = sphi 0, %s26
      %s29 = sphi 0, %s27
      %s30 = sphi 0, %s28
      %s40 = sphi 0, %s42
      %s43 = sphi 0, %s40
      %s44 = sphi 0, %s43
      %s60 = sphi 0, %s44
      %s66 = sphi 0, %s68
      %s69 = sphi 0, %s66
      %s70 = sphi 0, %s69
      %s86 = sphi 0, %s70
      %s92 = sphi 0, %s94
      %s95 = sphi 0, %s92
      %s96 = sphi 0, %s95
      %s112 = sphi 0, %s96
      %s118 = sphi 0, %s120
      %s121 = sphi 0, %s118
      %s122 = sphi 0, %s121
      %s138 = sphi 0, %s122
      %s144 = sphi 0, %s146
      %s147 = sphi 0, %s144
      %s148 = sphi 0, %s147
      %s164 = sphi 0, %s148
    $region4: #{tpu_custom_call.1} parent=1 // loop_header_branch
      %21 = sbr.rel (%p19) target = $region8
    $region5: #{tpu_custom_call.1} parent=1 // loop_body
      %s23 = ssub.s32 %s18, 1
      %s24 = ssub.s32 %s18, 2
      %s31 = sadd.s32 1, %s26
      %p32 = scmp.ge.s32.totalorder %s31, 2
      %s33 = scalar_select %p32, 0, %s31
      %s34 = sadd.s32 1, %s25
      %s35 = scalar_select %p32, %s34, %s25
      %p36 = scmp.ge.s32.totalorder %s35, 1
      %s37 = scalar_select %p36, 0, %s35
      %s38 = ssub.s32 %s25, %s37
      %p39 = scmp.eq.s32.totalorder %s38, 0
      %s41 = sadd.s32 %s40, 1
      %s42 = scalar_select %p39, %s40, %s41
      %p45 = pneg %p39
      %p46 = scmp.eq.s32.totalorder %s18, 1
      %p47 = por %p45, %p46
      %p48 = scmp.ne.s32.totalorder %s40, %s43
      %p49 = scmp.eq.s32.totalorder %s18, 0
      %p50 = por %p48, %p49
      %p51 = scmp.ne.s32.totalorder %s40, %s43
      %p52 = scmp.eq.s32.totalorder %s23, 1
      %p53 = por %p51, %p52
      %p54 = scmp.ne.s32.totalorder %s43, %s44
      %p55 = scmp.eq.s32.totalorder %s23, 0
      %p56 = por %p54, %p55
      %p57 = scmp.ne.s32.totalorder %s43, %s44
      %p58 = scmp.eq.s32.totalorder %s24, 1
      %p59 = por %p57, %p58
      %p61 = scmp.ne.s32.totalorder %s44, %s60
      %p62 = scmp.eq.s32.totalorder %s24, 0
      %p63 = por %p61, %p62
      %s64 = ssub.s32 %s26, %s33
      %p65 = scmp.eq.s32.totalorder %s64, 0
      %s67 = sadd.s32 %s66, 1
      %s68 = scalar_select %p65, %s66, %s67
      %p71 = pneg %p65
      %p72 = scmp.eq.s32.totalorder %s18, 1
      %p73 = por %p71, %p72
      %p74 = scmp.ne.s32.totalorder %s66, %s69
      %p75 = scmp.eq.s32.totalorder %s18, 0
      %p76 = por %p74, %p75
      %p77 = scmp.ne.s32.totalorder %s66, %s69
      %p78 = scmp.eq.s32.totalorder %s23, 1
      %p79 = por %p77, %p78
      %p80 = scmp.ne.s32.totalorder %s69, %s70
      %p81 = scmp.eq.s32.totalorder %s23, 0
      %p82 = por %p80, %p81
      %p83 = scmp.ne.s32.totalorder %s69, %s70
      %p84 = scmp.eq.s32.totalorder %s24, 1
      %p85 = por %p83, %p84
      %p87 = scmp.ne.s32.totalorder %s70, %s86
      %p88 = scmp.eq.s32.totalorder %s24, 0
      %p89 = por %p87, %p88
      %s90 = ssub.s32 %s26, %s33
      %p91 = scmp.eq.s32.totalorder %s90, 0
      %s93 = sadd.s32 %s92, 1
      %s94 = scalar_select %p91, %s92, %s93
      %p97 = pneg %p91
      %p98 = scmp.eq.s32.totalorder %s18, 1
      %p99 = por %p97, %p98
      %p100 = scmp.ne.s32.totalorder %s92, %s95
      %p101 = scmp.eq.s32.totalorder %s18, 0
      %p102 = por %p100, %p101
      %p103 = scmp.ne.s32.totalorder %s92, %s95
      %p104 = scmp.eq.s32.totalorder %s23, 1
      %p105 = por %p103, %p104
      %p106 = scmp.ne.s32.totalorder %s95, %s96
      %p107 = scmp.eq.s32.totalorder %s23, 0
      %p108 = por %p106, %p107
      %p109 = scmp.ne.s32.totalorder %s95, %s96
      %p110 = scmp.eq.s32.totalorder %s24, 1
      %p111 = por %p109, %p110
      %p113 = scmp.ne.s32.totalorder %s96, %s112
      %p114 = scmp.eq.s32.totalorder %s24, 0
      %p115 = por %p113, %p114
      %s116 = ssub.s32 %s26, %s33
      %p117 = scmp.eq.s32.totalorder %s116, 0
      %s119 = sadd.s32 %s118, 1
      %s120 = scalar_select %p117, %s118, %s119
      %p123 = pneg %p117
      %p124 = scmp.eq.s32.totalorder %s18, 1
      %p125 = por %p123, %p124
      %p126 = scmp.ne.s32.totalorder %s118, %s121
      %p127 = scmp.eq.s32.totalorder %s18, 0
      %p128 = por %p126, %p127
      %p129 = scmp.ne.s32.totalorder %s118, %s121
      %p130 = scmp.eq.s32.totalorder %s23, 1
      %p131 = por %p129, %p130
      %p132 = scmp.ne.s32.totalorder %s121, %s122
      %p133 = scmp.eq.s32.totalorder %s23, 0
      %p134 = por %p132, %p133
      %p135 = scmp.ne.s32.totalorder %s121, %s122
      %p136 = scmp.eq.s32.totalorder %s24, 1
      %p137 = por %p135, %p136
      %p139 = scmp.ne.s32.totalorder %s122, %s138
      %p140 = scmp.eq.s32.totalorder %s24, 0
      %p141 = por %p139, %p140
      %s142 = ssub.s32 %s25, %s37
      %p143 = scmp.eq.s32.totalorder %s142, 0
      %s145 = sadd.s32 %s144, 1
      %s146 = scalar_select %p143, %s144, %s145
      %p149 = pneg %p143
      %p150 = scmp.eq.s32.totalorder %s18, 1
      %p151 = por %p149, %p150
      %p152 = scmp.ne.s32.totalorder %s144, %s147
      %p153 = scmp.eq.s32.totalorder %s18, 0
      %p154 = por %p152, %p153
      %p155 = scmp.ne.s32.totalorder %s144, %s147
      %p156 = scmp.eq.s32.totalorder %s23, 1
      %p157 = por %p155, %p156
      %p158 = scmp.ne.s32.totalorder %s147, %s148
      %p159 = scmp.eq.s32.totalorder %s23, 0
      %p160 = por %p158, %p159
      %p161 = scmp.ne.s32.totalorder %s147, %s148
      %p162 = scmp.eq.s32.totalorder %s24, 1
      %p163 = por %p161, %p162
      %p165 = scmp.ne.s32.totalorder %s148, %s164
      %p166 = scmp.eq.s32.totalorder %s24, 0
      %p167 = por %p165, %p166
      %p168 = scmp.le.s32.totalorder 1, %s18
      %p169 = scmp.lt.s32.totalorder %s18, 3
      %p170 = pnand %p168, %p169
      %p171 = pneg %p170
      // Predicated region
      $region9: #{tpu_custom_call.1} parent=5 // pred_check
        _
      $region10: #{tpu_custom_call.1} parent=5 // pred_check_branch
        %173 = sbr.rel (%p170) target = $region12
      $region11: #{tpu_custom_call.1} parent=5 // pred_region
        %s174 = ssub.s32 %s18, 1
        // Predicated region
        $region13: #{tpu_custom_call.1} parent=11 // pred_check
          %p175 = pneg %p56
        $region14: #{tpu_custom_call.1} parent=11 // pred_check_branch
          %177 = sbr.rel (%p175) target = $region16
        $region15: #{tpu_custom_call.1} parent=11 // pred_region
          %s178 = smul.u32 2, %s27
          %180 = vsyncadd [#allocation3], 0
          %s181 = smul.addr %s178, 8
          %s182 = scalar_lea.hbm %s0, %s181
          %s183 = sshll.u32 %s182, 4
          %s184 = int_to_ptr.hbm [resolvable:$true] %s183
          %s185 = sshll.u32 [#allocation2], 4
          %s186 = int_to_ptr.vmem [resolvable:$true] %s185
          %191 = dma.hbm_to_vmem [thread:$0]  %s184, 256, %s186, [#allocation3], 128, 128, 8
        $region16: #{tpu_custom_call.1} parent=11 // pred_fallthru
          _
      $region12: #{tpu_custom_call.1} parent=5 // pred_fallthru
        _
      %p192 = scmp.lt.s32.totalorder %s18, 2
      // Predicated region
      $region17: #{tpu_custom_call.1} parent=5 // pred_check
        %p193 = pneg %p192
      $region18: #{tpu_custom_call.1} parent=5 // pred_check_branch
        %195 = sbr.rel (%p193) target = $region20
      $region19: #{tpu_custom_call.1} parent=5 // pred_region
        // Predicated region
        $region21: #{tpu_custom_call.1} parent=19 // pred_check
          %p196 = pneg %p76
        $region22: #{tpu_custom_call.1} parent=19 // pred_check_branch
          %198 = sbr.rel (%p196) target = $region24
        $region23: #{tpu_custom_call.1} parent=19 // pred_region
          %s199 = sand.u32 %s18, 1
          %s200 = scalar_lea.sflag [#allocation6], %s199
          %s201 = sand.u32 %s66, 1
          %s202 = smul.addr %s201, 256
          %s203 = scalar_lea.vmem [#allocation5], %s202
          %s204 = smul.u32 2, %s26
          %206 = vsyncadd %s200, 0
          %s207 = smul.addr %s204, 8
          %s208 = scalar_lea.hbm %s1, %s207
          %s209 = sshll.u32 %s208, 4
          %s210 = int_to_ptr.hbm [resolvable:$true] %s209
          %s211 = sshll.u32 %s203, 4
          %s212 = int_to_ptr.vmem [resolvable:$true] %s211
          %217 = dma.hbm_to_vmem [thread:$0]  %s210, 4096, %s212, %s200, 512, 256, 16
        $region24: #{tpu_custom_call.1} parent=19 // pred_fallthru
          _
        // Predicated region
        $region25: #{tpu_custom_call.1} parent=19 // pred_check
          %p218 = pneg %p102
        $region26: #{tpu_custom_call.1} parent=19 // pred_check_branch
          %220 = sbr.rel (%p218) target = $region28
        $region27: #{tpu_custom_call.1} parent=19 // pred_region
          %s221 = sand.u32 %s18, 1
          %s222 = scalar_lea.sflag [#allocation6], %s221
          %s223 = sand.u32 %s92, 1
          %s224 = smul.addr %s223, 256
          %s225 = scalar_lea.vmem [#allocation7], %s224
          %s226 = smul.u32 2, %s26
          %228 = vsyncadd %s222, 0
          %s229 = smul.addr %s226, 8
          %s230 = scalar_lea.hbm %s2, %s229
          %s231 = sshll.u32 %s230, 4
          %s232 = int_to_ptr.hbm [resolvable:$true] %s231
          %s233 = sshll.u32 %s225, 4
          %s234 = int_to_ptr.vmem [resolvable:$true] %s233
          %239 = dma.hbm_to_vmem [thread:$0]  %s232, 4096, %s234, %s222, 512, 256, 16
        $region28: #{tpu_custom_call.1} parent=19 // pred_fallthru
          _
        // Predicated region
        $region29: #{tpu_custom_call.1} parent=19 // pred_check
          %p240 = pneg %p128
        $region30: #{tpu_custom_call.1} parent=19 // pred_check_branch
          %242 = sbr.rel (%p240) target = $region32
        $region31: #{tpu_custom_call.1} parent=19 // pred_region
          %s243 = sand.u32 %s118, 1
          %s244 = scalar_lea.sflag [#allocation9], %s243
          %s245 = sand.u32 %s118, 1
          %s246 = smul.addr %s245, 256
          %s247 = scalar_lea.vmem [#allocation8], %s246
          %s248 = smul.u32 32, %s26
          %250 = vsyncadd %s244, 0
          %s251 = smul.addr %s248, 8
          %s252 = scalar_lea.hbm %s3, %s251
          %s253 = sshll.u32 %s252, 4
          %s254 = int_to_ptr.hbm [resolvable:$true] %s253
          %s255 = sshll.u32 %s247, 4
          %s256 = int_to_ptr.vmem [resolvable:$true] %s255
          %261 = dma.hbm_to_vmem [thread:$0]  %s254, 4096, %s256, %s244, 128, 128, 8
        $region32: #{tpu_custom_call.1} parent=19 // pred_fallthru
          _
      $region20: #{tpu_custom_call.1} parent=5 // pred_fallthru
        _
      %p262 = scmp.le.s32.totalorder 1, %s18
      %p263 = scmp.lt.s32.totalorder %s18, 3
      %p264 = pnand %p262, %p263
      %p265 = pneg %p264
      // Predicated region
      $region33: #{tpu_custom_call.1} parent=5 // pred_check
        _
      $region34: #{tpu_custom_call.1} parent=5 // pred_check_branch
        %267 = sbr.rel (%p264) target = $region36
      $region35: #{tpu_custom_call.1} parent=5 // pred_region
        %s268 = ssub.s32 %s18, 1
        // Predicated region
        $region37: #{tpu_custom_call.1} parent=35 // pred_check
          %p269 = pneg %p56
        $region38: #{tpu_custom_call.1} parent=35 // pred_check_branch
          %271 = sbr.rel (%p269) target = $region40
        $region39: #{tpu_custom_call.1} parent=35 // pred_region
          %273 = dma.done [#allocation3], 256
        $region40: #{tpu_custom_call.1} parent=35 // pred_fallthru
          _
        %s274 = sand.u32 %s23, 1
        %s275 = scalar_lea.sflag [#allocation6], %s274
        %s276 = sand.u32 %s69, 1
        %s277 = smul.addr %s276, 256
        %s278 = scalar_lea.vmem [#allocation5], %s277
        // Predicated region
        $region41: #{tpu_custom_call.1} parent=35 // pred_check
          %p279 = pneg %p82
        $region42: #{tpu_custom_call.1} parent=35 // pred_check_branch
          %281 = sbr.rel (%p279) target = $region44
        $region43: #{tpu_custom_call.1} parent=35 // pred_region
          %283 = dma.done %s275, 4096
        $region44: #{tpu_custom_call.1} parent=35 // pred_fallthru
          _
        %s284 = sand.u32 %s23, 1
        %s285 = scalar_lea.sflag [#allocation6], %s284
        %s286 = sand.u32 %s95, 1
        %s287 = smul.addr %s286, 256
        %s288 = scalar_lea.vmem [#allocation7], %s287
        // Predicated region
        $region45: #{tpu_custom_call.1} parent=35 // pred_check
          %p289 = pneg %p108
        $region46: #{tpu_custom_call.1} parent=35 // pred_check_branch
          %291 = sbr.rel (%p289) target = $region48
        $region47: #{tpu_custom_call.1} parent=35 // pred_region
          %293 = dma.done %s285, 4096
        $region48: #{tpu_custom_call.1} parent=35 // pred_fallthru
          _
        %s294 = sand.u32 %s121, 1
        %s295 = scalar_lea.sflag [#allocation9], %s294
        %s296 = sand.u32 %s121, 1
        %s297 = smul.addr %s296, 256
        %s298 = scalar_lea.vmem [#allocation8], %s297
        // Predicated region
        $region49: #{tpu_custom_call.1} parent=35 // pred_check
          %p299 = pneg %p134
        $region50: #{tpu_custom_call.1} parent=35 // pred_check_branch
          %301 = sbr.rel (%p299) target = $region52
        $region51: #{tpu_custom_call.1} parent=35 // pred_region
          %303 = dma.done %s295, 4096
        $region52: #{tpu_custom_call.1} parent=35 // pred_fallthru
          _
        %p304 = pneg %p56
        %p305 = pneg %p53
        %s306 = sand.u32 %s23, 1
        %s307 = scalar_lea.sflag [#allocation6], %s306
        %s308 = sand.u32 %s69, 1
        %s309 = smul.addr %s308, 256
        %s310 = scalar_lea.vmem [#allocation5], %s309
        %p311 = pneg %p82
        %p312 = pneg %p79
        %s313 = sand.u32 %s23, 1
        %s314 = scalar_lea.sflag [#allocation6], %s313
        %s315 = sand.u32 %s95, 1
        %s316 = smul.addr %s315, 256
        %s317 = scalar_lea.vmem [#allocation7], %s316
        %p318 = pneg %p108
        %p319 = pneg %p105
        %s320 = sand.u32 %s121, 1
        %s321 = scalar_lea.sflag [#allocation9], %s320
        %s322 = sand.u32 %s121, 1
        %s323 = smul.addr %s322, 256
        %s324 = scalar_lea.vmem [#allocation8], %s323
        %p325 = pneg %p134
        %p326 = pneg %p131
        %p327 = pneg %p160
        %p328 = pneg %p157
        %s329 = smul.u32 2, %s27
        %s330 = smul.u32 2, %s28
        %s331 = smul.u32 2, %s28
        %s332 = smul.u32 32, %s28
        %s333 = smul.u32 2, %s27
        %p334 = scmp.eq.s32.totalorder %s28, 0
        // Predicated region
        $region53: #{tpu_custom_call.1} parent=35 // pred_check
          %p335 = pneg %p334
        $region54: #{tpu_custom_call.1} parent=35 // pred_check_branch
          %337 = sbr.rel (%p335) target = $region56
        $region55: #{tpu_custom_call.1} parent=35 // pred_region
          %338 = vst [vmem:[#allocation10] sm:$0xff] 0.0
          %339 = vst [vmem:[#allocation10 + $0x8] sm:$0xff] 0.0
        $region56: #{tpu_custom_call.1} parent=35 // pred_fallthru
          _
        %v340 = vld [vmem:[#allocation10] sm:$0xff]
        %v341 = vld [vmem:[#allocation10 + $0x8] sm:$0xff]
        %v342 = vld [vmem:[#allocation2] sm:$0xff]
        %v343 = vld [vmem:[#allocation2 + $0x8] sm:$0xff]
        %v344 = vld [vmem:[%s278] sm:$0xff]
        %v345 = vld [vmem:[%s278 + $0x8] sm:$0xff]
        %v346 = vld [vmem:[%s278 + $0x10] sm:$0xff]
        %v347 = vld [vmem:[%s278 + $0x18] sm:$0xff]
        %v348 = vld [vmem:[%s278 + $0x20] sm:$0xff]
        %v349 = vld [vmem:[%s278 + $0x28] sm:$0xff]
        %v350 = vld [vmem:[%s278 + $0x30] sm:$0xff]
        %v351 = vld [vmem:[%s278 + $0x38] sm:$0xff]
        %v352 = vld [vmem:[%s278 + $0x40] sm:$0xff]
        %v353 = vld [vmem:[%s278 + $0x48] sm:$0xff]
        %v354 = vld [vmem:[%s278 + $0x50] sm:$0xff]
        %v355 = vld [vmem:[%s278 + $0x58] sm:$0xff]
        %v356 = vld [vmem:[%s278 + $0x60] sm:$0xff]
        %v357 = vld [vmem:[%s278 + $0x68] sm:$0xff]
        %v358 = vld [vmem:[%s278 + $0x70] sm:$0xff]
        %v359 = vld [vmem:[%s278 + $0x78] sm:$0xff]
        %v360 = vld [vmem:[%s278 + $0x80] sm:$0xff]
        %v361 = vld [vmem:[%s278 + $0x88] sm:$0xff]
        %v362 = vld [vmem:[%s278 + $0x90] sm:$0xff]
        %v363 = vld [vmem:[%s278 + $0x98] sm:$0xff]
        %v364 = vld [vmem:[%s278 + $0xa0] sm:$0xff]
        %v365 = vld [vmem:[%s278 + $0xa8] sm:$0xff]
        %v366 = vld [vmem:[%s278 + $0xb0] sm:$0xff]
        %v367 = vld [vmem:[%s278 + $0xb8] sm:$0xff]
        %v368 = vld [vmem:[%s278 + $0xc0] sm:$0xff]
        %v369 = vld [vmem:[%s278 + $0xc8] sm:$0xff]
        %v370 = vld [vmem:[%s278 + $0xd0] sm:$0xff]
        %v371 = vld [vmem:[%s278 + $0xd8] sm:$0xff]
        %v372 = vld [vmem:[%s278 + $0xe0] sm:$0xff]
        %v373 = vld [vmem:[%s278 + $0xe8] sm:$0xff]
        %v374 = vld [vmem:[%s278 + $0xf0] sm:$0xff]
        %v375 = vld [vmem:[%s278 + $0xf8] sm:$0xff]
        %376 = vmatpush.msra.mxu0 %v374
        %377 = vmatpush.msra.mxu0 %v372
        %378 = vmatpush.msra.mxu0 %v370
        %379 = vmatpush.msra.mxu0 %v368
        %380 = vmatpush.msra.mxu0 %v366
        %381 = vmatpush.msra.mxu0 %v364
        %382 = vmatpush.msra.mxu0 %v362
        %383 = vmatpush.msra.mxu0 %v360
        %384 = vmatpush.msra.mxu0 %v358
        %385 = vmatpush.msra.mxu0 %v356
        %386 = vmatpush.msra.mxu0 %v354
        %387 = vmatpush.msra.mxu0 %v352
        %388 = vmatpush.msra.mxu0 %v350
        %389 = vmatpush.msra.mxu0 %v348
        %390 = vmatpush.msra.mxu0 %v346
        %391 = vmatpush.msra.mxu0 %v344
        %392 = vmatmul.f32.gmra.mxu0 %v342
        %v393 = vpop.f32.mrf.mxu0
        %v394 = vadd.f32 0.0, %v393
        %395 = vmatmul.f32.gmra.mxu0 %v343
        %v396 = vpop.f32.mrf.mxu0
        %v397 = vadd.f32 0.0, %v396
        %398 = vdwg.mxu0
        %399 = vmatpush.msra.mxu0 %v375
        %400 = vmatpush.msra.mxu0 %v373
        %401 = vmatpush.msra.mxu0 %v371
        %402 = vmatpush.msra.mxu0 %v369
        %403 = vmatpush.msra.mxu0 %v367
        %404 = vmatpush.msra.mxu0 %v365
        %405 = vmatpush.msra.mxu0 %v363
        %406 = vmatpush.msra.mxu0 %v361
        %407 = vmatpush.msra.mxu0 %v359
        %408 = vmatpush.msra.mxu0 %v357
        %409 = vmatpush.msra.mxu0 %v355
        %410 = vmatpush.msra.mxu0 %v353
        %411 = vmatpush.msra.mxu0 %v351
        %412 = vmatpush.msra.mxu0 %v349
        %413 = vmatpush.msra.mxu0 %v347
        %414 = vmatpush.msra.mxu0 %v345
        %415 = vmatmul.f32.gmra.mxu0 %v342
        %v416 = vpop.f32.mrf.mxu0
        %v417 = vadd.f32 0.0, %v416
        %418 = vmatmul.f32.gmra.mxu0 %v343
        %v419 = vpop.f32.mrf.mxu0
        %v420 = vadd.f32 0.0, %v419
        %421 = vdwg.mxu0
        %v422 = vld [vmem:[%s288] sm:$0xff]
        %v423 = vld [vmem:[%s288 + $0x8] sm:$0xff]
        %v424 = vld [vmem:[%s288 + $0x10] sm:$0xff]
        %v425 = vld [vmem:[%s288 + $0x18] sm:$0xff]
        %v426 = vld [vmem:[%s288 + $0x20] sm:$0xff]
        %v427 = vld [vmem:[%s288 + $0x28] sm:$0xff]
        %v428 = vld [vmem:[%s288 + $0x30] sm:$0xff]
        %v429 = vld [vmem:[%s288 + $0x38] sm:$0xff]
        %v430 = vld [vmem:[%s288 + $0x40] sm:$0xff]
        %v431 = vld [vmem:[%s288 + $0x48] sm:$0xff]
        %v432 = vld [vmem:[%s288 + $0x50] sm:$0xff]
        %v433 = vld [vmem:[%s288 + $0x58] sm:$0xff]
        %v434 = vld [vmem:[%s288 + $0x60] sm:$0xff]
        %v435 = vld [vmem:[%s288 + $0x68] sm:$0xff]
        %v436 = vld [vmem:[%s288 + $0x70] sm:$0xff]
        %v437 = vld [vmem:[%s288 + $0x78] sm:$0xff]
        %v438 = vld [vmem:[%s288 + $0x80] sm:$0xff]
        %v439 = vld [vmem:[%s288 + $0x88] sm:$0xff]
        %v440 = vld [vmem:[%s288 + $0x90] sm:$0xff]
        %v441 = vld [vmem:[%s288 + $0x98] sm:$0xff]
        %v442 = vld [vmem:[%s288 + $0xa0] sm:$0xff]
        %v443 = vld [vmem:[%s288 + $0xa8] sm:$0xff]
        %v444 = vld [vmem:[%s288 + $0xb0] sm:$0xff]
        %v445 = vld [vmem:[%s288 + $0xb8] sm:$0xff]
        %v446 = vld [vmem:[%s288 + $0xc0] sm:$0xff]
        %v447 = vld [vmem:[%s288 + $0xc8] sm:$0xff]
        %v448 = vld [vmem:[%s288 + $0xd0] sm:$0xff]
        %v449 = vld [vmem:[%s288 + $0xd8] sm:$0xff]
        %v450 = vld [vmem:[%s288 + $0xe0] sm:$0xff]
        %v451 = vld [vmem:[%s288 + $0xe8] sm:$0xff]
        %v452 = vld [vmem:[%s288 + $0xf0] sm:$0xff]
        %v453 = vld [vmem:[%s288 + $0xf8] sm:$0xff]
        %454 = vmatpush.msra.mxu0 %v452
        %455 = vmatpush.msra.mxu0 %v450
        %456 = vmatpush.msra.mxu0 %v448
        %457 = vmatpush.msra.mxu0 %v446
        %458 = vmatpush.msra.mxu0 %v444
        %459 = vmatpush.msra.mxu0 %v442
        %460 = vmatpush.msra.mxu0 %v440
        %461 = vmatpush.msra.mxu0 %v438
        %462 = vmatpush.msra.mxu0 %v436
        %463 = vmatpush.msra.mxu0 %v434
        %464 = vmatpush.msra.mxu0 %v432
        %465 = vmatpush.msra.mxu0 %v430
        %466 = vmatpush.msra.mxu0 %v428
        %467 = vmatpush.msra.mxu0 %v426
        %468 = vmatpush.msra.mxu0 %v424
        %469 = vmatpush.msra.mxu0 %v422
        %470 = vmatmul.f32.gmra.mxu0 %v342
        %v471 = vpop.f32.mrf.mxu0
        %v472 = vadd.f32 0.0, %v471
        %473 = vmatmul.f32.gmra.mxu0 %v343
        %v474 = vpop.f32.mrf.mxu0
        %v475 = vadd.f32 0.0, %v474
        %476 = vdwg.mxu0
        %477 = vmatpush.msra.mxu0 %v453
        %478 = vmatpush.msra.mxu0 %v451
        %479 = vmatpush.msra.mxu0 %v449
        %480 = vmatpush.msra.mxu0 %v447
        %481 = vmatpush.msra.mxu0 %v445
        %482 = vmatpush.msra.mxu0 %v443
        %483 = vmatpush.msra.mxu0 %v441
        %484 = vmatpush.msra.mxu0 %v439
        %485 = vmatpush.msra.mxu0 %v437
        %486 = vmatpush.msra.mxu0 %v435
        %487 = vmatpush.msra.mxu0 %v433
        %488 = vmatpush.msra.mxu0 %v431
        %489 = vmatpush.msra.mxu0 %v429
        %490 = vmatpush.msra.mxu0 %v427
        %491 = vmatpush.msra.mxu0 %v425
        %492 = vmatpush.msra.mxu0 %v423
        %493 = vmatmul.f32.gmra.mxu0 %v342
        %v494 = vpop.f32.mrf.mxu0
        %v495 = vadd.f32 0.0, %v494
        %496 = vmatmul.f32.gmra.mxu0 %v343
        %v497 = vpop.f32.mrf.mxu0
        %v498 = vadd.f32 0.0, %v497
        %499 = vdwg.mxu0
        %v500 = vxor.u32 %v394, 2147483648
        %v501 = vxor.u32 %v417, 2147483648
        %v502 = vxor.u32 %v397, 2147483648
        %v503 = vxor.u32 %v420, 2147483648
        %v504 = vmul.f32 %v500, 1.442695
        %v505 = vpow.pop %v504
        %v506 = vmul.f32 %v501, 1.442695
        %v507 = vpow.pop %v506
        %v508 = vmul.f32 %v502, 1.442695
        %v509 = vpow.pop %v508
        %v510 = vmul.f32 %v503, 1.442695
        %v511 = vpow.pop %v510
        %v512 = vadd.f32 %v505, 1.0
        %v513 = vadd.f32 %v507, 1.0
        %v514 = vadd.f32 %v509, 1.0
        %v515 = vadd.f32 %v511, 1.0
        %v516 = vrcp.pop %v512
        %v517 = vmul.f32 %v512, %v516
        %v518 = vsub.f32 1.0, %v517
        %v519 = vmul.f32 %v516, %v518
        %v520 = vadd.f32 %v516, %v519
        %vm521 = vweird.f32 %v512
        %vm522 = vweird.f32 %v516
        %vm523 = vmor %vm521, %vm522
        %v524 = vsel %vm523, %v516, %v520
        %v525 = vand.u32 2147483647, %v512
        %vm526 = vcmp.eq.f32.partialorder %v525, 8.507059e+37
        %v527 = vand.u32 %v512, 2147483648
        %v528 = vor.u32 1.1754944e-38, %v527
        %v529 = vsel %vm526, %v528, %v524
        %v530 = vmul.f32 1.0, %v529
        %v531 = vrcp.pop %v513
        %v532 = vmul.f32 %v513, %v531
        %v533 = vsub.f32 1.0, %v532
        %v534 = vmul.f32 %v531, %v533
        %v535 = vadd.f32 %v531, %v534
        %vm536 = vweird.f32 %v513
        %vm537 = vweird.f32 %v531
        %vm538 = vmor %vm536, %vm537
        %v539 = vsel %vm538, %v531, %v535
        %v540 = vand.u32 2147483647, %v513
        %vm541 = vcmp.eq.f32.partialorder %v540, 8.507059e+37
        %v542 = vand.u32 %v513, 2147483648
        %v543 = vor.u32 1.1754944e-38, %v542
        %v544 = vsel %vm541, %v543, %v539
        %v545 = vmul.f32 1.0, %v544
        %v546 = vrcp.pop %v514
        %v547 = vmul.f32 %v514, %v546
        %v548 = vsub.f32 1.0, %v547
        %v549 = vmul.f32 %v546, %v548
        %v550 = vadd.f32 %v546, %v549
        %vm551 = vweird.f32 %v514
        %vm552 = vweird.f32 %v546
        %vm553 = vmor %vm551, %vm552
        %v554 = vsel %vm553, %v546, %v550
        %v555 = vand.u32 2147483647, %v514
        %vm556 = vcmp.eq.f32.partialorder %v555, 8.507059e+37
        %v557 = vand.u32 %v514, 2147483648
        %v558 = vor.u32 1.1754944e-38, %v557
        %v559 = vsel %vm556, %v558, %v554
        %v560 = vmul.f32 1.0, %v559
        %v561 = vrcp.pop %v515
        %v562 = vmul.f32 %v515, %v561
        %v563 = vsub.f32 1.0, %v562
        %v564 = vmul.f32 %v561, %v563
        %v565 = vadd.f32 %v561, %v564
        %vm566 = vweird.f32 %v515
        %vm567 = vweird.f32 %v561
        %vm568 = vmor %vm566, %vm567
        %v569 = vsel %vm568, %v561, %v565
        %v570 = vand.u32 2147483647, %v515
        %vm571 = vcmp.eq.f32.partialorder %v570, 8.507059e+37
        %v572 = vand.u32 %v515, 2147483648
        %v573 = vor.u32 1.1754944e-38, %v572
        %v574 = vsel %vm571, %v573, %v569
        %v575 = vmul.f32 1.0, %v574
        %v576 = vmul.f32 %v394, %v530
        %v577 = vmul.f32 %v417, %v545
        %v578 = vmul.f32 %v397, %v560
        %v579 = vmul.f32 %v420, %v575
        %v580 = vmul.f32 %v576, %v472
        %v581 = vmul.f32 %v577, %v495
        %v582 = vmul.f32 %v578, %v475
        %v583 = vmul.f32 %v579, %v498
        %v584 = vld [vmem:[%s298] sm:$0xff]
        %v585 = vld [vmem:[%s298 + $0x8] sm:$0xff]
        %v586 = vld [vmem:[%s298 + $0x10] sm:$0xff]
        %v587 = vld [vmem:[%s298 + $0x18] sm:$0xff]
        %v588 = vld [vmem:[%s298 + $0x20] sm:$0xff]
        %v589 = vld [vmem:[%s298 + $0x28] sm:$0xff]
        %v590 = vld [vmem:[%s298 + $0x30] sm:$0xff]
        %v591 = vld [vmem:[%s298 + $0x38] sm:$0xff]
        %v592 = vld [vmem:[%s298 + $0x40] sm:$0xff]
        %v593 = vld [vmem:[%s298 + $0x48] sm:$0xff]
        %v594 = vld [vmem:[%s298 + $0x50] sm:$0xff]
        %v595 = vld [vmem:[%s298 + $0x58] sm:$0xff]
        %v596 = vld [vmem:[%s298 + $0x60] sm:$0xff]
        %v597 = vld [vmem:[%s298 + $0x68] sm:$0xff]
        %v598 = vld [vmem:[%s298 + $0x70] sm:$0xff]
        %v599 = vld [vmem:[%s298 + $0x78] sm:$0xff]
        %v600 = vld [vmem:[%s298 + $0x80] sm:$0xff]
        %v601 = vld [vmem:[%s298 + $0x88] sm:$0xff]
        %v602 = vld [vmem:[%s298 + $0x90] sm:$0xff]
        %v603 = vld [vmem:[%s298 + $0x98] sm:$0xff]
        %v604 = vld [vmem:[%s298 + $0xa0] sm:$0xff]
        %v605 = vld [vmem:[%s298 + $0xa8] sm:$0xff]
        %v606 = vld [vmem:[%s298 + $0xb0] sm:$0xff]
        %v607 = vld [vmem:[%s298 + $0xb8] sm:$0xff]
        %v608 = vld [vmem:[%s298 + $0xc0] sm:$0xff]
        %v609 = vld [vmem:[%s298 + $0xc8] sm:$0xff]
        %v610 = vld [vmem:[%s298 + $0xd0] sm:$0xff]
        %v611 = vld [vmem:[%s298 + $0xd8] sm:$0xff]
        %v612 = vld [vmem:[%s298 + $0xe0] sm:$0xff]
        %v613 = vld [vmem:[%s298 + $0xe8] sm:$0xff]
        %v614 = vld [vmem:[%s298 + $0xf0] sm:$0xff]
        %v615 = vld [vmem:[%s298 + $0xf8] sm:$0xff]
        %616 = vmatpush.msra.mxu0 %v599
        %617 = vmatpush.msra.mxu0 %v598
        %618 = vmatpush.msra.mxu0 %v597
        %619 = vmatpush.msra.mxu0 %v596
        %620 = vmatpush.msra.mxu0 %v595
        %621 = vmatpush.msra.mxu0 %v594
        %622 = vmatpush.msra.mxu0 %v593
        %623 = vmatpush.msra.mxu0 %v592
        %624 = vmatpush.msra.mxu0 %v591
        %625 = vmatpush.msra.mxu0 %v590
        %626 = vmatpush.msra.mxu0 %v589
        %627 = vmatpush.msra.mxu0 %v588
        %628 = vmatpush.msra.mxu0 %v587
        %629 = vmatpush.msra.mxu0 %v586
        %630 = vmatpush.msra.mxu0 %v585
        %631 = vmatpush.msra.mxu0 %v584
        %632 = vmatmul.f32.gmra.mxu0 %v580
        %v633 = vpop.f32.mrf.mxu0
        %v634 = vadd.f32 0.0, %v633
        %635 = vmatmul.f32.gmra.mxu0 %v582
        %v636 = vpop.f32.mrf.mxu0
        %v637 = vadd.f32 0.0, %v636
        %638 = vdwg.mxu0
        %639 = vmatpush.msra.mxu0 %v615
        %640 = vmatpush.msra.mxu0 %v614
        %641 = vmatpush.msra.mxu0 %v613
        %642 = vmatpush.msra.mxu0 %v612
        %643 = vmatpush.msra.mxu0 %v611
        %644 = vmatpush.msra.mxu0 %v610
        %645 = vmatpush.msra.mxu0 %v609
        %646 = vmatpush.msra.mxu0 %v608
        %647 = vmatpush.msra.mxu0 %v607
        %648 = vmatpush.msra.mxu0 %v606
        %649 = vmatpush.msra.mxu0 %v605
        %650 = vmatpush.msra.mxu0 %v604
        %651 = vmatpush.msra.mxu0 %v603
        %652 = vmatpush.msra.mxu0 %v602
        %653 = vmatpush.msra.mxu0 %v601
        %654 = vmatpush.msra.mxu0 %v600
        %655 = vmatmul.f32.gmra.mxu0 %v581
        %v656 = vpop.f32.mrf.mxu0
        %v657 = vadd.f32 %v634, %v656
        %658 = vmatmul.f32.gmra.mxu0 %v583
        %v659 = vpop.f32.mrf.mxu0
        %v660 = vadd.f32 %v637, %v659
        %661 = vdwg.mxu0
        %v662 = vadd.f32 %v340, %v657
        %v663 = vadd.f32 %v341, %v660
        %664 = vst [vmem:[#allocation10] sm:$0xff] %v662
        %665 = vst [vmem:[#allocation10 + $0x8] sm:$0xff] %v663
        // Predicated region
        $region57: #{tpu_custom_call.1} parent=35 // pred_check
          %p666 = pneg %p157
        $region58: #{tpu_custom_call.1} parent=35 // pred_check_branch
          %668 = sbr.rel (%p666) target = $region60
        $region59: #{tpu_custom_call.1} parent=35 // pred_region
          %s669 = smul.u32 2, %s27
          %671 = vsyncadd [#allocation4], 0
          %s672 = smul.addr %s669, 8
          %s673 = scalar_lea.hbm %s4, %s672
          %s674 = sshll.u32 [#allocation10], 4
          %s675 = int_to_ptr.vmem [resolvable:$true] %s674
          %s676 = sshll.u32 %s673, 4
          %s677 = int_to_ptr.hbm [resolvable:$true] %s676
          %682 = dma.vmem_to_hbm [thread:$0]  %s675, 256, %s677, [#allocation4], 128, 128, 8
        $region60: #{tpu_custom_call.1} parent=35 // pred_fallthru
          _
        // Predicated region
        $region61: #{tpu_custom_call.1} parent=35 // pred_check
          %p683 = pneg %p157
        $region62: #{tpu_custom_call.1} parent=35 // pred_check_branch
          %685 = sbr.rel (%p683) target = $region64
        $region63: #{tpu_custom_call.1} parent=35 // pred_region
          %687 = dma.done [#allocation4], 256
        $region64: #{tpu_custom_call.1} parent=35 // pred_fallthru
          _
      $region36: #{tpu_custom_call.1} parent=5 // pred_fallthru
        _
      %p688 = scmp.le.s32.totalorder 2, %s18
      // Predicated region
      $region65: #{tpu_custom_call.1} parent=5 // pred_check
        %p689 = pneg %p688
      $region66: #{tpu_custom_call.1} parent=5 // pred_check_branch
        %691 = sbr.rel (%p689) target = $region68
      $region67: #{tpu_custom_call.1} parent=5 // pred_region
        %s692 = ssub.s32 %s18, 2
      $region68: #{tpu_custom_call.1} parent=5 // pred_fallthru
        _
    $region6: #{tpu_custom_call.1} parent=1 // loop_footer
      %s22 = sadd.s32 1, %s18
    $region7: #{tpu_custom_call.1} parent=1 // loop_footer_branch
      %17 = sbr.rel target = $region3
    $region8: #{tpu_custom_call.1} parent=1 // loop_exit
      _
    %693 = vsyncpa [#allocation3], 1
    %s694 = scalar_lea.sflag [#allocation3], 1
    %695 = vsyncpa %s694, 1
    %696 = vsyncpa [#allocation6], 1
    %s697 = scalar_lea.sflag [#allocation6], 1
    %698 = vsyncpa %s697, 1
    %699 = vsyncpa [#allocation9], 1
    %s700 = scalar_lea.sflag [#allocation9], 1
    %701 = vsyncpa %s700, 1
    %702 = vsyncpa [#allocation4], 1
    %s703 = scalar_lea.sflag [#allocation4], 1
    %704 = vsyncpa %s703, 1

</llo_original>
